<compile_context>
chip_gen: v7x
topology: tpu7x:2x2x1
jax: 0.10.0
libtpu: 0.0.40
codegen_flags: <defaults>
</compile_context>

<pallas_src>
import functools

import jax
import jax.numpy as jnp
from jax import lax
from jax.experimental import pallas as pl
from jax.experimental.pallas import tpu as pltpu


def _round_up(x, m):
    return (x + m - 1) // m * m


def _conv1x3_relu(x, w_cat, b, m_prev, m_next, cout_p):
    """One (1,3) 'same' conv + bias + ReLU on a (K, L) tile.

    x      : (k, L)        activations, rows of length W flattened along L
    w_cat  : (3*cout_p, k)  the three taps stacked (each padded to 8 rows)
    b      : (cout_p, 1)
    m_prev : (cout_p, L)    1.0 except 0.0 where (position % W) == 0
    m_next : (cout_p, L)    1.0 except 0.0 where (position % W) == W - 1
    """
    L = x.shape[-1]
    # Single matmul for all three taps: M = 3*cout_p, K = k, N = L (lane-dense).
    p = jnp.dot(w_cat, x, preferred_element_type=jnp.float32)      # (3*cout_p, L)
    # Tap 0 needs x[w-1]: roll products right by +1 and zero row starts.
    # Tap 2 needs x[w+1]: roll left by 1 == circular roll by L-1 (non-negative),
    # zero row ends.  Blocks are row-aligned so block edges are row edges too.
    y = (pltpu.roll(p[0 * cout_p:1 * cout_p], 1, axis=1) * m_prev
         + p[1 * cout_p:2 * cout_p]
         + pltpu.roll(p[2 * cout_p:3 * cout_p], L - 1, axis=1) * m_next
         + b)
    return jnp.maximum(y, 0.0)


def _standard_unit_kernel(x_ref, mask_ref, w1_ref, b1_ref, w2_ref, b2_ref,
                          o_ref, *, cout, cout_p):
    L = x_ref.shape[-1]
    # Hoist the mask broadcast: JAX doesn't CSE broadcast_in_dim, so do it once
    # and reuse it in both convs (keeps the only busy VPU slot lighter).
    m_prev = jnp.broadcast_to(mask_ref[0:1, :], (cout_p, L))
    m_next = jnp.broadcast_to(mask_ref[1:2, :], (cout_p, L))
    # Compute in f32; bf16 stays an I/O-only format (v5e VPU has no bf16).
    x = x_ref[...].astype(jnp.float32)                              # (cin, L)
    h = _conv1x3_relu(x, w1_ref[...], b1_ref[...], m_prev, m_next, cout_p)
    # Dropout(0.2): identity in eval/inference mode.
    y = _conv1x3_relu(h, w2_ref[...], b2_ref[...], m_prev, m_next, cout_p)
    # Dropout(0.2): identity in eval/inference mode.
    o_ref[...] = y[:cout, :].astype(o_ref.dtype)


def _choose_block_len(h, w, cin, cout, cout_p, io_itemsize, vmem_budget_bytes):
    """Largest lane-block length L = rows * W along the flattened H*W axis s.t.
    (a) blocks are row-aligned and tile H*W exactly,
    (b) L is a multiple of 128 (lane-dense) or the whole axis,
    (c) a conservative VMEM estimate fits the budget.
    Prefers L == H*W (one contiguous DMA, minimal per-step overhead)."""
    hw = h * w
    # Bytes per unit of L: double-buffered input + output tiles (io dtype) plus
    # in-kernel f32 temporaries (x upcast, tap products, rolled copies, masks,
    # intermediate h, output y).
    per_l = 2 * 2 * (cin + cout) * io_itemsize + 4 * (cin + 14 * cout_p)
    max_l = max(w, vmem_budget_bytes // per_l)
    candidates = sorted(
        rows * w for rows in range(1, h + 1)
        if h % rows == 0 and ((rows * w) % 128 == 0 or rows * w == hw))
    best = candidates[0]
    for cand in candidates:                 # largest candidate within budget
        if cand <= max_l:
            best = cand
    # Note: we deliberately do NOT shrink L to manufacture extra grid steps —
    # the batch grid axis already provides parallelism for v7x's two
    # TensorCores, and extra steps only add per-step overhead on v5e/v6e.
    return best


def standard_unit(x_nchw, w1, b1, w2, b2, *,
                  vmem_budget_bytes=16 * 1024 * 1024,
                  vmem_limit_bytes=48 * 1024 * 1024):
    """StandardUnit forward.

    x_nchw: (N, Cin, H, W); torch weights w: (Cout, Cin, 1, 3), b: (Cout,).
    Output dtype follows the input dtype: pass bf16 activations for a bf16
    I/O path (halves HBM bytes); compute/accumulation stays f32 in-kernel.
    Defaults fit v7x's 64 MiB-per-TC VMEM while being a large raise over the
    scoped defaults on v5e/v6e (128 MiB physical).
    """
    n, cin, h, w = x_nchw.shape
    cout = w1.shape[0]
    cout_p = _round_up(cout, 8)   # align tap blocks to the f32 sublane pack
    hw = h * w
    L = _choose_block_len(h, w, cin, cout, cout_p,
                          io_itemsize=jnp.dtype(x_nchw.dtype).itemsize,
                          vmem_budget_bytes=vmem_budget_bytes)
    n_blocks = hw // L

    # Free reshape: merge trailing H, W dims — no transpose, no extra HBM pass.
    x_flat = x_nchw.reshape(n, cin, hw)

    # Torch weight (Cout, Cin, 1, 3) -> (3*Cout_p, K): taps stacked on the
    # output dim (single matmul per conv), each tap block zero-padded to an
    # 8-row boundary so the per-tap slices of the product start sublane-aligned.
    def cat_taps(wt, k_pad):
        co, ci = wt.shape[0], wt.shape[1]
        blk = jnp.zeros((3, cout_p, k_pad), jnp.float32)
        blk = blk.at[:, :co, :ci].set(
            jnp.transpose(wt[:, :, 0, :], (2, 0, 1)).astype(jnp.float32))
        return blk.reshape(3 * cout_p, k_pad)

    w1_cat = cat_taps(w1, cin)       # (3*cout_p, cin)
    w2_cat = cat_taps(w2, cout_p)    # (3*cout_p, cout_p): K padded to match h
    b1_c = jnp.zeros((cout_p, 1), jnp.float32).at[:cout, 0].set(
        b1.astype(jnp.float32))
    b2_c = jnp.zeros((cout_p, 1), jnp.float32).at[:cout, 0].set(
        b2.astype(jnp.float32))

    # Row-boundary masks (identical for every block since blocks are
    # row-aligned); constant index_map => fetched once, stays resident.
    wpos = jnp.arange(L, dtype=jnp.int32) % w
    mask = jnp.stack([wpos != 0, wpos != w - 1]).astype(jnp.float32)  # (2, L)

    kernel = functools.partial(_standard_unit_kernel, cout=cout, cout_p=cout_p)
    out = pl.pallas_call(
        kernel,
        out_shape=jax.ShapeDtypeStruct((n, cout, hw), x_nchw.dtype),
        grid_spec=pltpu.PrefetchScalarGridSpec(
            num_scalar_prefetch=0,
            grid=(n, n_blocks),
            in_specs=[
                pl.BlockSpec((None, cin, L), lambda i, j: (i, 0, j)),
                pl.BlockSpec((2, L), lambda i, j: (0, 0)),
                pl.BlockSpec((3 * cout_p, cin), lambda i, j: (0, 0)),
                pl.BlockSpec((cout_p, 1), lambda i, j: (0, 0)),
                pl.BlockSpec((3 * cout_p, cout_p), lambda i, j: (0, 0)),
                pl.BlockSpec((cout_p, 1), lambda i, j: (0, 0)),
            ],
            out_specs=pl.BlockSpec((None, cout, L), lambda i, j: (i, 0, j)),
        ),
        compiler_params=pltpu.CompilerParams(
            # Both axes independent: v7x's two TensorCores can shard the grid;
            # on single-TC v5e/v6e this is just a sequential loop.
            dimension_semantics=("parallel", "parallel"),
            vmem_limit_bytes=vmem_limit_bytes),
    )(x_flat, mask, w1_cat, b1_c, w2_cat, b2_c)

    return out.reshape(n, cout, h, w)   # free reshape back to NCHW


# ----------------------------- reference & test -----------------------------

def _conv1x3_ref(x_nchw, w, b):
    y = lax.conv_general_dilated(
        x_nchw, w, window_strides=(1, 1), padding=((0, 0), (1, 1)),
        dimension_numbers=("NCHW", "OIHW", "NCHW"))
    return y + b[None, :, None, None]


def standard_unit_ref(x_nchw, w1, b1, w2, b2):
    h = jnp.maximum(_conv1x3_ref(x_nchw, w1, b1), 0.0)
    return jnp.maximum(_conv1x3_ref(h, w2, b2), 0.0)


def init_params(key, in_ch, out_ch):
    """Deterministic PyTorch-Conv2d-style uniform init."""
    k1, k2, k3, k4 = jax.random.split(key, 4)
    bound1 = 1.0 / jnp.sqrt(in_ch * 1 * 3)
    bound2 = 1.0 / jnp.sqrt(out_ch * 1 * 3)
    w1 = jax.random.uniform(k1, (out_ch, in_ch, 1, 3), jnp.float32, -bound1, bound1)
    b1 = jax.random.uniform(k2, (out_ch,), jnp.float32, -bound1, bound1)
    w2 = jax.random.uniform(k3, (out_ch, out_ch, 1, 3), jnp.float32, -bound2, bound2)
    b2 = jax.random.uniform(k4, (out_ch,), jnp.float32, -bound2, bound2)
    return w1, b1, w2, b2


if __name__ == "__main__":
    key = jax.random.PRNGKey(0)
    kx, kp = jax.random.split(key)

    N, in_ch, H, W = 2, 4, 16, 16
    out_ch = 8

    x = jax.random.normal(kx, (N, in_ch, H, W), jnp.float32)
    w1, b1, w2, b2 = init_params(kp, in_ch, out_ch)

    run = jax.jit(standard_unit)

    # f32 path: exact check against the XLA conv reference.
    y = jax.block_until_ready(run(x, w1, b1, w2, b2))
    y_ref = standard_unit_ref(x, w1, b1, w2, b2)
    assert y.shape == (N, out_ch, H, W), y.shape
    max_err = float(jnp.max(jnp.abs(y - y_ref)))
    assert jnp.allclose(y, y_ref, atol=1e-4, rtol=1e-4), max_err

    # bf16 I/O path (halves HBM traffic; compute stays f32 in-kernel).
    y_bf16 = jax.block_until_ready(run(x.astype(jnp.bfloat16), w1, b1, w2, b2))
    assert y_bf16.shape == (N, out_ch, H, W), y_bf16.shape
    assert y_bf16.dtype == jnp.bfloat16, y_bf16.dtype
    bf16_err = float(jnp.max(jnp.abs(y_bf16.astype(jnp.float32) - y_ref)))
    assert bf16_err < 0.1, bf16_err

    print("KERNEL_OK")
</pallas_src>

<mosaic_0001>
module attributes {stable_mosaic.version = 11 : i64} {
  func.func @_standard_unit_kernel(%arg0: i32, %arg1: i32, %arg2: memref<1x4x256xf32, #tpu.memory_space<vmem>>, %arg3: memref<2x256xf32, #tpu.memory_space<vmem>>, %arg4: memref<24x4xf32, #tpu.memory_space<vmem>>, %arg5: memref<8x1xf32, #tpu.memory_space<vmem>>, %arg6: memref<24x8xf32, #tpu.memory_space<vmem>>, %arg7: memref<8x1xf32, #tpu.memory_space<vmem>>, %arg8: memref<1x8x256xf32, #tpu.memory_space<vmem>>) attributes {dimension_semantics = [#tpu.dimension_semantics<parallel>, #tpu.dimension_semantics<parallel>], iteration_bounds = array<i64: 2, 1>, scalar_prefetch = 0 : i64, scratch_operands = 0 : i64, tpu.core_type = #tpu.core_type<tc>, window_params = [{transform_indices = @transform_0, window_bounds = array<i64: 1, 4, 256>}, {pipeline_mode = #tpu.pipeline_mode<synchronous>, transform_indices = @transform_1, window_bounds = array<i64: 2, 256>}, {pipeline_mode = #tpu.pipeline_mode<synchronous>, transform_indices = @transform_2, window_bounds = array<i64: 24, 4>}, {pipeline_mode = #tpu.pipeline_mode<synchronous>, transform_indices = @transform_3, window_bounds = array<i64: 8, 1>}, {pipeline_mode = #tpu.pipeline_mode<synchronous>, transform_indices = @transform_4, window_bounds = array<i64: 24, 8>}, {pipeline_mode = #tpu.pipeline_mode<synchronous>, transform_indices = @transform_5, window_bounds = array<i64: 8, 1>}, {transform_indices = @transform_6, window_bounds = array<i64: 1, 8, 256>}]} {
    %c0 = arith.constant 0 : index
    %c0_0 = arith.constant 0 : index
    %0 = vector.load %arg3[%c0, %c0_0] : memref<2x256xf32, #tpu.memory_space<vmem>>, vector<1x256xf32>
    %1 = vector.shape_cast %0 : vector<1x256xf32> to vector<1x256xf32>
    %2 = vector.broadcast %1 : vector<1x256xf32> to vector<8x256xf32>
    %c1 = arith.constant 1 : index
    %c0_1 = arith.constant 0 : index
    %3 = vector.load %arg3[%c1, %c0_1] : memref<2x256xf32, #tpu.memory_space<vmem>>, vector<1x256xf32>
    %4 = vector.shape_cast %3 : vector<1x256xf32> to vector<1x256xf32>
    %5 = vector.broadcast %4 : vector<1x256xf32> to vector<8x256xf32>
    %c0_2 = arith.constant 0 : index
    %c0_3 = arith.constant 0 : index
    %c0_4 = arith.constant 0 : index
    %6 = vector.load %arg2[%c0_2, %c0_3, %c0_4] : memref<1x4x256xf32, #tpu.memory_space<vmem>>, vector<1x4x256xf32>
    %7 = vector.shape_cast %6 : vector<1x4x256xf32> to vector<4x256xf32>
    %c0_5 = arith.constant 0 : index
    %c0_6 = arith.constant 0 : index
    %8 = vector.load %arg4[%c0_5, %c0_6] : memref<24x4xf32, #tpu.memory_space<vmem>>, vector<24x4xf32>
    %c0_7 = arith.constant 0 : index
    %c0_8 = arith.constant 0 : index
    %9 = vector.load %arg5[%c0_7, %c0_8] : memref<8x1xf32, #tpu.memory_space<vmem>>, vector<8x1xf32>
    %cst = arith.constant dense<0.000000e+00> : vector<24x256xf32>
    %10 = tpu.matmul %8, %7, %cst {dimension_numbers = #tpu.dot_dimension_numbers<[1], [0], [0], [1], [0, 0, 1, 1], [], []>} : vector<24x4xf32>, vector<4x256xf32>, vector<24x256xf32> -> vector<24x256xf32>
    %11 = vector.extract_strided_slice %10 {offsets = [0, 0], sizes = [8, 256], strides = [1, 1]} : vector<24x256xf32> to vector<8x256xf32>
    %c1_i32 = arith.constant 1 : i32
    %12 = tpu.dynamic_rotate %11 by %c1_i32 dim 1 : vector<8x256xf32>, i32 -> vector<8x256xf32>
    %13 = arith.mulf %12, %2 : vector<8x256xf32>
    %14 = vector.extract_strided_slice %10 {offsets = [8, 0], sizes = [8, 256], strides = [1, 1]} : vector<24x256xf32> to vector<8x256xf32>
    %15 = arith.addf %13, %14 : vector<8x256xf32>
    %16 = vector.extract_strided_slice %10 {offsets = [16, 0], sizes = [8, 256], strides = [1, 1]} : vector<24x256xf32> to vector<8x256xf32>
    %c255_i32 = arith.constant 255 : i32
    %17 = tpu.dynamic_rotate %16 by %c255_i32 dim 1 : vector<8x256xf32>, i32 -> vector<8x256xf32>
    %18 = arith.mulf %17, %5 : vector<8x256xf32>
    %19 = arith.addf %15, %18 : vector<8x256xf32>
    %20 = vector.broadcast %9 : vector<8x1xf32> to vector<8x256xf32>
    %21 = arith.addf %19, %20 : vector<8x256xf32>
    %cst_9 = arith.constant 0.000000e+00 : f32
    %22 = vector.broadcast %cst_9 : f32 to vector<8x256xf32>
    %23 = arith.maximumf %21, %22 : vector<8x256xf32>
    %c0_10 = arith.constant 0 : index
    %c0_11 = arith.constant 0 : index
    %24 = vector.load %arg6[%c0_10, %c0_11] : memref<24x8xf32, #tpu.memory_space<vmem>>, vector<24x8xf32>
    %c0_12 = arith.constant 0 : index
    %c0_13 = arith.constant 0 : index
    %25 = vector.load %arg7[%c0_12, %c0_13] : memref<8x1xf32, #tpu.memory_space<vmem>>, vector<8x1xf32>
    %cst_14 = arith.constant dense<0.000000e+00> : vector<24x256xf32>
    %26 = tpu.matmul %24, %23, %cst_14 {dimension_numbers = #tpu.dot_dimension_numbers<[1], [0], [0], [1], [0, 0, 1, 1], [], []>} : vector<24x8xf32>, vector<8x256xf32>, vector<24x256xf32> -> vector<24x256xf32>
    %27 = vector.extract_strided_slice %26 {offsets = [0, 0], sizes = [8, 256], strides = [1, 1]} : vector<24x256xf32> to vector<8x256xf32>
    %c1_i32_15 = arith.constant 1 : i32
    %28 = tpu.dynamic_rotate %27 by %c1_i32_15 dim 1 : vector<8x256xf32>, i32 -> vector<8x256xf32>
    %29 = arith.mulf %28, %2 : vector<8x256xf32>
    %30 = vector.extract_strided_slice %26 {offsets = [8, 0], sizes = [8, 256], strides = [1, 1]} : vector<24x256xf32> to vector<8x256xf32>
    %31 = arith.addf %29, %30 : vector<8x256xf32>
    %32 = vector.extract_strided_slice %26 {offsets = [16, 0], sizes = [8, 256], strides = [1, 1]} : vector<24x256xf32> to vector<8x256xf32>
    %c255_i32_16 = arith.constant 255 : i32
    %33 = tpu.dynamic_rotate %32 by %c255_i32_16 dim 1 : vector<8x256xf32>, i32 -> vector<8x256xf32>
    %34 = arith.mulf %33, %5 : vector<8x256xf32>
    %35 = arith.addf %31, %34 : vector<8x256xf32>
    %36 = vector.broadcast %25 : vector<8x1xf32> to vector<8x256xf32>
    %37 = arith.addf %35, %36 : vector<8x256xf32>
    %cst_17 = arith.constant 0.000000e+00 : f32
    %38 = vector.broadcast %cst_17 : f32 to vector<8x256xf32>
    %39 = arith.maximumf %37, %38 : vector<8x256xf32>
    %c0_18 = arith.constant 0 : index
    %c0_19 = arith.constant 0 : index
    %c0_20 = arith.constant 0 : index
    %40 = vector.load %arg8[%c0_18, %c0_19, %c0_20] : memref<1x8x256xf32, #tpu.memory_space<vmem>>, vector<1x8x256xf32>
    %41 = vector.shape_cast %40 : vector<1x8x256xf32> to vector<8x256xf32>
    %42 = vector.shape_cast %39 : vector<8x256xf32> to vector<1x8x256xf32>
    tpu.vector_store %arg8[%c0_18, %c0_19, %c0_20], %42 {strides = array<i32>} : memref<1x8x256xf32, #tpu.memory_space<vmem>>, vector<1x8x256xf32>,
    return
  }
  func.func @transform_0(%arg0: i32, %arg1: i32) -> (i32, i32, i32) {
    %c0_i32 = arith.constant 0 : i32
    %c0_i32_0 = arith.constant 0 : i32
    return %arg0, %c0_i32, %arg1 : i32, i32, i32
  }
  func.func @transform_1(%arg0: i32, %arg1: i32) -> (i32, i32) {
    %c0_i32 = arith.constant 0 : i32
    %c0_i32_0 = arith.constant 0 : i32
    %c0_i32_1 = arith.constant 0 : i32
    return %c0_i32, %c0_i32_0 : i32, i32
  }
  func.func @transform_2(%arg0: i32, %arg1: i32) -> (i32, i32) {
    %c0_i32 = arith.constant 0 : i32
    %c0_i32_0 = arith.constant 0 : i32
    %c0_i32_1 = arith.constant 0 : i32
    return %c0_i32, %c0_i32_0 : i32, i32
  }
  func.func @transform_3(%arg0: i32, %arg1: i32) -> (i32, i32) {
    %c0_i32 = arith.constant 0 : i32
    %c0_i32_0 = arith.constant 0 : i32
    %c0_i32_1 = arith.constant 0 : i32
    return %c0_i32, %c0_i32_0 : i32, i32
  }
  func.func @transform_4(%arg0: i32, %arg1: i32) -> (i32, i32) {
    %c0_i32 = arith.constant 0 : i32
    %c0_i32_0 = arith.constant 0 : i32
    %c0_i32_1 = arith.constant 0 : i32
    return %c0_i32, %c0_i32_0 : i32, i32
  }
  func.func @transform_5(%arg0: i32, %arg1: i32) -> (i32, i32) {
    %c0_i32 = arith.constant 0 : i32
    %c0_i32_0 = arith.constant 0 : i32
    %c0_i32_1 = arith.constant 0 : i32
    return %c0_i32, %c0_i32_0 : i32, i32
  }
  func.func @transform_6(%arg0: i32, %arg1: i32) -> (i32, i32, i32) {
    %c0_i32 = arith.constant 0 : i32
    %c0_i32_0 = arith.constant 0 : i32
    return %arg0, %c0_i32, %arg1 : i32, i32, i32
  }
}

</mosaic_0001>

<llo_original>
// kernel: standard_unit.1
$region0: #{standard_unit.1}
  #allocation0 [shape = 'u32[]', space=smem, size = 0x4, offset = 0x4, fixed_abs, tag = 'smem constant byte address 0x4 - core index']
  #allocation1 [shape = 'u32[144,128]{1,0:T(1,128)}', space=vmem, size = 0x12000, scoped, tag = 'internal scratch']
  %s0 = inlined_call_operand.vmem [shape: f32[2,4,256], index: 0, kind: input, shape index: {}]
  %s1 = inlined_call_operand.vmem [shape: f32[2,256], index: 1, kind: input, shape index: {}]
  %s2 = inlined_call_operand.vmem [shape: f32[24,4], index: 2, kind: input, shape index: {}]
  %s3 = inlined_call_operand.vmem [shape: f32[8,1], index: 3, kind: input, shape index: {}]
  %s4 = inlined_call_operand.vmem [shape: f32[24,8], index: 4, kind: input, shape index: {}]
  %s5 = inlined_call_operand.vmem [shape: f32[8,1], index: 5, kind: input, shape index: {}]
  %s6 = inlined_call_operand.vmem [shape: f32[2,8,256], index: 6, kind: output, shape index: {}]
  %s7 = sld [smem:[#allocation0]]
  $region57: #{standard_unit.1} parent=0
    _
  %s9 = ssub.s32 1, %s7
  %s10 = scalar_select 0, %s9, %s7
  loop: start=0, step=1, limit=4
  $region2: #{standard_unit.1} parent=0 // loop_pre_header
    _
  $region3: #{standard_unit.1} parent=0 // loop_header
    %s12 = sphi 0, %s16
    %p13 = scmp.ge.s32.totalorder %s12, 4
    %s19 = sphi 0, %s31
    %s20 = sphi 0, %s27
    %s21 = sphi 0, %s19
    %s22 = sphi 0, %s20
    %s23 = sphi 0, %s21
    %s24 = sphi 0, %s22
    %s36 = sphi 0, %s38
    %s39 = sphi 0, %s36
    %s40 = sphi 0, %s39
    %s56 = sphi 0, %s40
    %s60 = sphi 0, %s60
    %s62 = sphi 0, %s60
    %s63 = sphi 0, %s62
    %s77 = sphi 0, %s63
    %s81 = sphi 0, %s81
    %s83 = sphi 0, %s81
    %s84 = sphi 0, %s83
    %s98 = sphi 0, %s84
    %s102 = sphi 0, %s102
    %s104 = sphi 0, %s102
    %s105 = sphi 0, %s104
    %s119 = sphi 0, %s105
    %s123 = sphi 0, %s123
    %s125 = sphi 0, %s123
    %s126 = sphi 0, %s125
    %s140 = sphi 0, %s126
    %s144 = sphi 0, %s144
    %s146 = sphi 0, %s144
    %s147 = sphi 0, %s146
    %s161 = sphi 0, %s147
    %s169 = sphi 0, %s171
    %s172 = sphi 0, %s169
    %s173 = sphi 0, %s172
    %s189 = sphi 0, %s173
  $region4: #{standard_unit.1} parent=0 // loop_header_branch
    %15 = sbr.rel (%p13) target = $region8
  $region5: #{standard_unit.1} parent=0 // loop_body
    %s17 = ssub.s32 %s12, 1
    %s18 = ssub.s32 %s12, 2
    %s25 = sadd.s32 1, %s20
    %p26 = scmp.ge.s32.totalorder %s25, 1
    %s27 = scalar_select %p26, 0, %s25
    %s28 = sadd.s32 1, %s19
    %s29 = scalar_select %p26, %s28, %s19
    %p30 = scmp.ge.s32.totalorder %s29, 2
    %s31 = scalar_select %p30, 0, %s29
    %s32 = ssub.s32 %s19, %s31
    %s33 = ssub.s32 %s20, %s27
    %s34 = sor.u32 %s32, %s33
    %p35 = scmp.eq.s32.totalorder %s34, 0
    %s37 = sadd.s32 %s36, 1
    %s38 = scalar_select %p35, %s36, %s37
    %p41 = pneg %p35
    %p42 = scmp.eq.s32.totalorder %s12, 1
    %p43 = por %p41, %p42
    %p44 = scmp.ne.s32.totalorder %s36, %s39
    %p45 = scmp.eq.s32.totalorder %s12, 0
    %p46 = por %p44, %p45
    %p47 = scmp.ne.s32.totalorder %s36, %s39
    %p48 = scmp.eq.s32.totalorder %s17, 1
    %p49 = por %p47, %p48
    %p50 = scmp.ne.s32.totalorder %s39, %s40
    %p51 = scmp.eq.s32.totalorder %s17, 0
    %p52 = por %p50, %p51
    %p53 = scmp.ne.s32.totalorder %s39, %s40
    %p54 = scmp.eq.s32.totalorder %s18, 1
    %p55 = por %p53, %p54
    %p57 = scmp.ne.s32.totalorder %s40, %s56
    %p58 = scmp.eq.s32.totalorder %s18, 0
    %p59 = por %p57, %p58
    %s61 = sadd.s32 %s60, 1
    %p64 = scmp.eq.s32.totalorder %s12, 1
    %p65 = scmp.ne.s32.totalorder %s60, %s62
    %p66 = scmp.eq.s32.totalorder %s12, 0
    %p67 = por %p65, %p66
    %p68 = scmp.ne.s32.totalorder %s60, %s62
    %p69 = scmp.eq.s32.totalorder %s17, 1
    %p70 = por %p68, %p69
    %p71 = scmp.ne.s32.totalorder %s62, %s63
    %p72 = scmp.eq.s32.totalorder %s17, 0
    %p73 = por %p71, %p72
    %p74 = scmp.ne.s32.totalorder %s62, %s63
    %p75 = scmp.eq.s32.totalorder %s18, 1
    %p76 = por %p74, %p75
    %p78 = scmp.ne.s32.totalorder %s63, %s77
    %p79 = scmp.eq.s32.totalorder %s18, 0
    %p80 = por %p78, %p79
    %s82 = sadd.s32 %s81, 1
    %p85 = scmp.eq.s32.totalorder %s12, 1
    %p86 = scmp.ne.s32.totalorder %s81, %s83
    %p87 = scmp.eq.s32.totalorder %s12, 0
    %p88 = por %p86, %p87
    %p89 = scmp.ne.s32.totalorder %s81, %s83
    %p90 = scmp.eq.s32.totalorder %s17, 1
    %p91 = por %p89, %p90
    %p92 = scmp.ne.s32.totalorder %s83, %s84
    %p93 = scmp.eq.s32.totalorder %s17, 0
    %p94 = por %p92, %p93
    %p95 = scmp.ne.s32.totalorder %s83, %s84
    %p96 = scmp.eq.s32.totalorder %s18, 1
    %p97 = por %p95, %p96
    %p99 = scmp.ne.s32.totalorder %s84, %s98
    %p100 = scmp.eq.s32.totalorder %s18, 0
    %p101 = por %p99, %p100
    %s103 = sadd.s32 %s102, 1
    %p106 = scmp.eq.s32.totalorder %s12, 1
    %p107 = scmp.ne.s32.totalorder %s102, %s104
    %p108 = scmp.eq.s32.totalorder %s12, 0
    %p109 = por %p107, %p108
    %p110 = scmp.ne.s32.totalorder %s102, %s104
    %p111 = scmp.eq.s32.totalorder %s17, 1
    %p112 = por %p110, %p111
    %p113 = scmp.ne.s32.totalorder %s104, %s105
    %p114 = scmp.eq.s32.totalorder %s17, 0
    %p115 = por %p113, %p114
    %p116 = scmp.ne.s32.totalorder %s104, %s105
    %p117 = scmp.eq.s32.totalorder %s18, 1
    %p118 = por %p116, %p117
    %p120 = scmp.ne.s32.totalorder %s105, %s119
    %p121 = scmp.eq.s32.totalorder %s18, 0
    %p122 = por %p120, %p121
    %s124 = sadd.s32 %s123, 1
    %p127 = scmp.eq.s32.totalorder %s12, 1
    %p128 = scmp.ne.s32.totalorder %s123, %s125
    %p129 = scmp.eq.s32.totalorder %s12, 0
    %p130 = por %p128, %p129
    %p131 = scmp.ne.s32.totalorder %s123, %s125
    %p132 = scmp.eq.s32.totalorder %s17, 1
    %p133 = por %p131, %p132
    %p134 = scmp.ne.s32.totalorder %s125, %s126
    %p135 = scmp.eq.s32.totalorder %s17, 0
    %p136 = por %p134, %p135
    %p137 = scmp.ne.s32.totalorder %s125, %s126
    %p138 = scmp.eq.s32.totalorder %s18, 1
    %p139 = por %p137, %p138
    %p141 = scmp.ne.s32.totalorder %s126, %s140
    %p142 = scmp.eq.s32.totalorder %s18, 0
    %p143 = por %p141, %p142
    %s145 = sadd.s32 %s144, 1
    %p148 = scmp.eq.s32.totalorder %s12, 1
    %p149 = scmp.ne.s32.totalorder %s144, %s146
    %p150 = scmp.eq.s32.totalorder %s12, 0
    %p151 = por %p149, %p150
    %p152 = scmp.ne.s32.totalorder %s144, %s146
    %p153 = scmp.eq.s32.totalorder %s17, 1
    %p154 = por %p152, %p153
    %p155 = scmp.ne.s32.totalorder %s146, %s147
    %p156 = scmp.eq.s32.totalorder %s17, 0
    %p157 = por %p155, %p156
    %p158 = scmp.ne.s32.totalorder %s146, %s147
    %p159 = scmp.eq.s32.totalorder %s18, 1
    %p160 = por %p158, %p159
    %p162 = scmp.ne.s32.totalorder %s147, %s161
    %p163 = scmp.eq.s32.totalorder %s18, 0
    %p164 = por %p162, %p163
    %s165 = ssub.s32 %s19, %s31
    %s166 = ssub.s32 %s20, %s27
    %s167 = sor.u32 %s165, %s166
    %p168 = scmp.eq.s32.totalorder %s167, 0
    %s170 = sadd.s32 %s169, 1
    %s171 = scalar_select %p168, %s169, %s170
    %p174 = pneg %p168
    %p175 = scmp.eq.s32.totalorder %s12, 1
    %p176 = por %p174, %p175
    %p177 = scmp.ne.s32.totalorder %s169, %s172
    %p178 = scmp.eq.s32.totalorder %s12, 0
    %p179 = por %p177, %p178
    %p180 = scmp.ne.s32.totalorder %s169, %s172
    %p181 = scmp.eq.s32.totalorder %s17, 1
    %p182 = por %p180, %p181
    %p183 = scmp.ne.s32.totalorder %s172, %s173
    %p184 = scmp.eq.s32.totalorder %s17, 0
    %p185 = por %p183, %p184
    %p186 = scmp.ne.s32.totalorder %s172, %s173
    %p187 = scmp.eq.s32.totalorder %s18, 1
    %p188 = por %p186, %p187
    %p190 = scmp.ne.s32.totalorder %s173, %s189
    %p191 = scmp.eq.s32.totalorder %s18, 0
    %p192 = por %p190, %p191
    %p193 = scmp.le.s32.totalorder 1, %s12
    %p194 = scmp.lt.s32.totalorder %s12, 3
    %p195 = pnand %p193, %p194
    %p196 = pneg %p195
    // Predicated region
    $region9: #{standard_unit.1} parent=5 // pred_check
      _
    $region10: #{standard_unit.1} parent=5 // pred_check_branch
      %198 = sbr.rel (%p195) target = $region12
    $region11: #{standard_unit.1} parent=5 // pred_region
      %s199 = ssub.s32 %s12, 1
      // Predicated region
      $region13: #{standard_unit.1} parent=11 // pred_check
        %p200 = pneg %p73
      $region14: #{standard_unit.1} parent=11 // pred_check_branch
        %202 = sbr.rel (%p200) target = $region16
      $region15: #{standard_unit.1} parent=11 // pred_region
        _
      $region16: #{standard_unit.1} parent=11 // pred_fallthru
        _
      // Predicated region
      $region17: #{standard_unit.1} parent=11 // pred_check
        %p203 = pneg %p94
      $region18: #{standard_unit.1} parent=11 // pred_check_branch
        %205 = sbr.rel (%p203) target = $region20
      $region19: #{standard_unit.1} parent=11 // pred_region
        _
      $region20: #{standard_unit.1} parent=11 // pred_fallthru
        _
      // Predicated region
      $region21: #{standard_unit.1} parent=11 // pred_check
        %p206 = pneg %p115
      $region22: #{standard_unit.1} parent=11 // pred_check_branch
        %208 = sbr.rel (%p206) target = $region24
      $region23: #{standard_unit.1} parent=11 // pred_region
        _
      $region24: #{standard_unit.1} parent=11 // pred_fallthru
        _
      // Predicated region
      $region25: #{standard_unit.1} parent=11 // pred_check
        %p209 = pneg %p136
      $region26: #{standard_unit.1} parent=11 // pred_check_branch
        %211 = sbr.rel (%p209) target = $region28
      $region27: #{standard_unit.1} parent=11 // pred_region
        _
      $region28: #{standard_unit.1} parent=11 // pred_fallthru
        _
      // Predicated region
      $region29: #{standard_unit.1} parent=11 // pred_check
        %p212 = pneg %p157
      $region30: #{standard_unit.1} parent=11 // pred_check_branch
        %214 = sbr.rel (%p212) target = $region32
      $region31: #{standard_unit.1} parent=11 // pred_region
        _
      $region32: #{standard_unit.1} parent=11 // pred_fallthru
        _
    $region12: #{standard_unit.1} parent=5 // pred_fallthru
      _
    %p215 = scmp.lt.s32.totalorder %s12, 2
    // Predicated region
    $region33: #{standard_unit.1} parent=5 // pred_check
      %p216 = pneg %p215
    $region34: #{standard_unit.1} parent=5 // pred_check_branch
      %218 = sbr.rel (%p216) target = $region36
    $region35: #{standard_unit.1} parent=5 // pred_region
      // Predicated region
      $region37: #{standard_unit.1} parent=35 // pred_check
        %p219 = pneg %p46
      $region38: #{standard_unit.1} parent=35 // pred_check_branch
        %221 = sbr.rel (%p219) target = $region40
      $region39: #{standard_unit.1} parent=35 // pred_region
        %s222 = smul.u32 2, %s20
        %p223 = scmp.lt.s32.totalorder %s19, 1
        %s224 = scalar_select %p223, %s19, 1
        %p225 = scmp.lt.s32.totalorder %s222, 1
        %s226 = scalar_select %p225, %s222, 1
        %s227 = smul.addr %s224, 2
        %s228 = sadd.s32 %s226, %s227
        %s229 = smul.addr %s228, 4
        %s230 = scalar_lea.vmem %s0, %s229
        %s231 = smul.u32 2, %s20
      $region40: #{standard_unit.1} parent=35 // pred_fallthru
        _
    $region36: #{standard_unit.1} parent=5 // pred_fallthru
      _
    %p232 = scmp.le.s32.totalorder 1, %s12
    %p233 = scmp.lt.s32.totalorder %s12, 3
    %p234 = pnand %p232, %p233
    %p235 = pneg %p234
    // Predicated region
    $region41: #{standard_unit.1} parent=5 // pred_check
      _
    $region42: #{standard_unit.1} parent=5 // pred_check_branch
      %237 = sbr.rel (%p234) target = $region44
    $region43: #{standard_unit.1} parent=5 // pred_region
      %s238 = ssub.s32 %s12, 1
      %s239 = smul.u32 2, %s22
      %p240 = scmp.lt.s32.totalorder %s21, 1
      %s241 = scalar_select %p240, %s21, 1
      %p242 = scmp.lt.s32.totalorder %s239, 1
      %s243 = scalar_select %p242, %s239, 1
      %s244 = smul.addr %s241, 2
      %s245 = sadd.s32 %s243, %s244
      %s246 = smul.addr %s245, 4
      %s247 = scalar_lea.vmem %s0, %s246
      %p248 = pneg %p52
      %p249 = pneg %p49
      %p250 = pneg %p73
      %p251 = pneg %p70
      %p252 = pneg %p94
      %p253 = pneg %p91
      %p254 = pneg %p115
      %p255 = pneg %p112
      %p256 = pneg %p136
      %p257 = pneg %p133
      %p258 = pneg %p157
      %p259 = pneg %p154
      %p260 = pneg %p185
      %p261 = pneg %p182
      %s262 = smul.u32 2, %s22
      %p263 = scmp.lt.s32.totalorder %s21, 1
      %s264 = scalar_select %p263, %s21, 1
      %p265 = scmp.lt.s32.totalorder %s262, 1
      %s266 = scalar_select %p265, %s262, 1
      %s267 = smul.addr %s264, 2
      %s268 = sadd.s32 %s266, %s267
      %s269 = smul.addr %s268, 8
      %s270 = scalar_lea.vmem %s6, %s269
      %s271 = smul.u32 2, %s22
      %p272 = scmp.lt.s32.totalorder %s21, 1
      %s273 = scalar_select %p272, %s21, 1
      %p274 = scmp.lt.s32.totalorder %s271, 1
      %s275 = scalar_select %p274, %s271, 1
      %s276 = smul.addr %s273, 2
      %s277 = sadd.s32 %s275, %s276
      %s278 = smul.addr %s277, 4
      %s279 = scalar_lea.vmem %s0, %s278
      %s280 = smul.u32 2, %s22
      %s281 = smul.u32 2, %s22
      %p282 = scmp.lt.s32.totalorder %s21, 1
      %s283 = scalar_select %p282, %s21, 1
      %p284 = scmp.lt.s32.totalorder %s281, 1
      %s285 = scalar_select %p284, %s281, 1
      %s286 = smul.addr %s283, 2
      %s287 = sadd.s32 %s285, %s286
      %s288 = smul.addr %s287, 8
      %s289 = scalar_lea.vmem %s6, %s288
      %s290 = smul.u32 2, %s22
      %v291 = vld [vmem:[%s1] ss:$2 sm:$0x3]
      %v293 = vlaneseq
      %v294 = vshrl.u32 %v293, 7
      %v295 = vsub.s32 0, %v294
      %v296 = vrot.slane %v291, %v295
      %v297 = vlaneseq
      %v298 = vshrl.u32 %v297, 7
      %v299 = vsub.s32 1, %v298
      %v300 = vrot.slane %v291, %v299
      %s303 = scalar_lea.vmem %s1, 1
      %v304 = vld [vmem:[%s303] ss:$2 sm:$0x3]
      %v306 = vlaneseq
      %v307 = vshrl.u32 %v306, 7
      %v308 = vsub.s32 0, %v307
      %v309 = vrot.slane %v304, %v308
      %v310 = vlaneseq
      %v311 = vshrl.u32 %v310, 7
      %v312 = vsub.s32 1, %v311
      %v313 = vrot.slane %v304, %v312
      %v316 = vld [vmem:[%s279] sm:$0xff]
      %v317 = vld [vmem:[%s2] sm:$0xff]
      %v318 = vld [vmem:[%s2 + $0x8] sm:$0xff]
      %v319 = vld [vmem:[%s2 + $0x10] sm:$0xff]
      %v320 = vld [vmem:[%s3] sm:$0xff]
      %v322 = vcombine.high %v316, %v316
      %vm323 = vcmask 31744
      %v325 = vsel %vm323, %v317, 0
      %v328 = vsel %vm323, %v318, 0
      %v331 = vsel %vm323, %v319, 0
      %vm333 = vcmask 1043456
      %v334 = vsel %vm333, %v316, 0
      %v336 = vsel %vm333, %v322, 0
      %338 = vmatprep.subr.mxu0 %v336
      %339 = vmatpush1.msra.mxu0 %v334
      %340 = vmatprep.subr.mxu0 0.0
      %341 = vmatpush1.msra.mxu0 0.0
      %342 = vmatprep.subr.mxu0 0.0
      %343 = vmatpush1.msra.mxu0 0.0
      %344 = vmatprep.subr.mxu0 0.0
      %345 = vmatpush1.msra.mxu0 0.0
      %346 = vmatprep.subr.mxu0 0.0
      %347 = vmatpush1.msra.mxu0 0.0
      %348 = vmatprep.subr.mxu0 0.0
      %349 = vmatpush1.msra.mxu0 0.0
      %350 = vmatprep.subr.mxu0 0.0
      %351 = vmatpush1.msra.mxu0 0.0
      %352 = vmatprep.subr.mxu0 0.0
      %353 = vmatpush1.msra.mxu0 0.0
      %354 = vmatprep.subr.mxu0 0.0
      %355 = vmatpush1.msra.mxu0 0.0
      %356 = vmatprep.subr.mxu0 0.0
      %357 = vmatpush1.msra.mxu0 0.0
      %358 = vmatprep.subr.mxu0 0.0
      %359 = vmatpush1.msra.mxu0 0.0
      %360 = vmatprep.subr.mxu0 0.0
      %361 = vmatpush1.msra.mxu0 0.0
      %362 = vmatprep.subr.mxu0 0.0
      %363 = vmatpush1.msra.mxu0 0.0
      %364 = vmatprep.subr.mxu0 0.0
      %365 = vmatpush1.msra.mxu0 0.0
      %366 = vmatprep.subr.mxu0 0.0
      %367 = vmatpush1.msra.mxu0 0.0
      %368 = vmatprep.subr.mxu0 0.0
      %369 = vmatpush1.msra.mxu0 0.0
      %370 = vmatprep.subr.mxu0 0.0
      %371 = vmatpush1.msra.mxu0 0.0
      %372 = vmatprep.subr.mxu0 0.0
      %373 = vmatpush1.msra.mxu0 0.0
      %374 = vmatprep.subr.mxu0 0.0
      %375 = vmatpush1.msra.mxu0 0.0
      %376 = vmatprep.subr.mxu0 0.0
      %377 = vmatpush1.msra.mxu0 0.0
      %378 = vmatprep.subr.mxu0 0.0
      %379 = vmatpush1.msra.mxu0 0.0
      %380 = vmatprep.subr.mxu0 0.0
      %381 = vmatpush1.msra.mxu0 0.0
      %382 = vmatprep.subr.mxu0 0.0
      %383 = vmatpush1.msra.mxu0 0.0
      %384 = vmatprep.subr.mxu0 0.0
      %385 = vmatpush1.msra.mxu0 0.0
      %386 = vmatprep.subr.mxu0 0.0
      %387 = vmatpush1.msra.mxu0 0.0
      %388 = vmatprep.subr.mxu0 0.0
      %389 = vmatpush1.msra.mxu0 0.0
      %390 = vmatprep.subr.mxu0 0.0
      %391 = vmatpush1.msra.mxu0 0.0
      %392 = vmatprep.subr.mxu0 0.0
      %393 = vmatpush1.msra.mxu0 0.0
      %394 = vmatprep.subr.mxu0 0.0
      %395 = vmatpush1.msra.mxu0 0.0
      %396 = vmatprep.subr.mxu0 0.0
      %397 = vmatpush1.msra.mxu0 0.0
      %398 = vmatprep.subr.mxu0 0.0
      %399 = vmatpush1.msra.mxu0 0.0
      %400 = vmatprep.subr.mxu0 0.0
      %401 = vmatpush1.msra.mxu0 0.0
      %402 = vmatprep.mubr.f32.mxu0 0.0
      %403 = vmatmul.mubr.f32.gmra.mrb[0].mxu0 %v325
      %v404 = vpop.f32.mrb[0].mxu0
      %v405 = vadd.f32 0.0, %v404
      %v406 = vpop.f32.mrb[0].mxu0
      %v407 = vadd.f32 0.0, %v406
      %408 = vmatprep.mubr.f32.mxu0 0.0
      %409 = vmatmul.mubr.f32.gmra.mrb[0].mxu0 %v328
      %v410 = vpop.f32.mrb[0].mxu0
      %v411 = vadd.f32 0.0, %v410
      %v412 = vpop.f32.mrb[0].mxu0
      %v413 = vadd.f32 0.0, %v412
      %414 = vmatprep.mubr.f32.mxu0 0.0
      %415 = vmatmul.mubr.f32.gmra.mrb[0].mxu0 %v331
      %v416 = vpop.f32.mrb[0].mxu0
      %v417 = vadd.f32 0.0, %v416
      %v418 = vpop.f32.mrb[0].mxu0
      %v419 = vadd.f32 0.0, %v418
      %420 = vdwg.mxu0
      %421 = vrot.lane.b32.xlu0 %v405, 1
      %v422 = vpop.permute.xlu0 %421
      %423 = vrot.lane.b32.xlu0 %v407, 1
      %v424 = vpop.permute.xlu0 %423
      %v425 = vlaneseq
      %v426 = vand.u32 %v425, 127
      %vm427 = vcmp.lt.s32.totalorder %v426, 1
      %v428 = vsel %vm427, %v422, %v424
      %v429 = vsel %vm427, %v424, %v422
      %v430 = vmul.f32 %v429, %v296
      %v431 = vmul.f32 %v428, %v300
      %v432 = vadd.f32 %v430, %v411
      %v433 = vadd.f32 %v431, %v413
      %434 = vrot.lane.b32.xlu0 %v417, 127
      %v435 = vpop.permute.xlu0 %434
      %436 = vrot.lane.b32.xlu0 %v419, 127
      %v437 = vpop.permute.xlu0 %436
      %vm438 = vcmp.lt.s32.totalorder %v426, 127
      %v439 = vsel %vm438, %v435, %v437
      %v440 = vsel %vm438, %v437, %v435
      %v441 = vmul.f32 %v439, %v309
      %v442 = vmul.f32 %v440, %v313
      %v443 = vadd.f32 %v432, %v441
      %v444 = vadd.f32 %v433, %v442
      %446 = vset.pattern.permute.xlu0 0
      %447 = vperm.xlu0 %446, %v320
      %v448 = vpop.permute.xlu0 %447
      %v450 = vadd.f32 %v443, %v448
      %v451 = vadd.f32 %v444, %v448
      %v452 = vmax.f32 %v450, 0.0
      %v453 = vmax.f32 %v451, 0.0
      %v454 = vld [vmem:[%s4] sm:$0xff]
      %v455 = vld [vmem:[%s4 + $0x8] sm:$0xff]
      %v456 = vld [vmem:[%s4 + $0x10] sm:$0xff]
      %v457 = vld [vmem:[%s5] sm:$0xff]
      %vm458 = vcmask 64512
      %v460 = vsel %vm458, %v454, 0
      %v463 = vsel %vm458, %v455, 0
      %v466 = vsel %vm458, %v456, 0
      %468 = vmatprep.subr.mxu0 %v453
      %469 = vmatpush1.msra.mxu0 %v452
      %470 = vmatprep.subr.mxu0 0.0
      %471 = vmatpush1.msra.mxu0 0.0
      %472 = vmatprep.subr.mxu0 0.0
      %473 = vmatpush1.msra.mxu0 0.0
      %474 = vmatprep.subr.mxu0 0.0
      %475 = vmatpush1.msra.mxu0 0.0
      %476 = vmatprep.subr.mxu0 0.0
      %477 = vmatpush1.msra.mxu0 0.0
      %478 = vmatprep.subr.mxu0 0.0
      %479 = vmatpush1.msra.mxu0 0.0
      %480 = vmatprep.subr.mxu0 0.0
      %481 = vmatpush1.msra.mxu0 0.0
      %482 = vmatprep.subr.mxu0 0.0
      %483 = vmatpush1.msra.mxu0 0.0
      %484 = vmatprep.subr.mxu0 0.0
      %485 = vmatpush1.msra.mxu0 0.0
      %486 = vmatprep.subr.mxu0 0.0
      %487 = vmatpush1.msra.mxu0 0.0
      %488 = vmatprep.subr.mxu0 0.0
      %489 = vmatpush1.msra.mxu0 0.0
      %490 = vmatprep.subr.mxu0 0.0
      %491 = vmatpush1.msra.mxu0 0.0
      %492 = vmatprep.subr.mxu0 0.0
      %493 = vmatpush1.msra.mxu0 0.0
      %494 = vmatprep.subr.mxu0 0.0
      %495 = vmatpush1.msra.mxu0 0.0
      %496 = vmatprep.subr.mxu0 0.0
      %497 = vmatpush1.msra.mxu0 0.0
      %498 = vmatprep.subr.mxu0 0.0
      %499 = vmatpush1.msra.mxu0 0.0
      %500 = vmatprep.subr.mxu0 0.0
      %501 = vmatpush1.msra.mxu0 0.0
      %502 = vmatprep.subr.mxu0 0.0
      %503 = vmatpush1.msra.mxu0 0.0
      %504 = vmatprep.subr.mxu0 0.0
      %505 = vmatpush1.msra.mxu0 0.0
      %506 = vmatprep.subr.mxu0 0.0
      %507 = vmatpush1.msra.mxu0 0.0
      %508 = vmatprep.subr.mxu0 0.0
      %509 = vmatpush1.msra.mxu0 0.0
      %510 = vmatprep.subr.mxu0 0.0
      %511 = vmatpush1.msra.mxu0 0.0
      %512 = vmatprep.subr.mxu0 0.0
      %513 = vmatpush1.msra.mxu0 0.0
      %514 = vmatprep.subr.mxu0 0.0
      %515 = vmatpush1.msra.mxu0 0.0
      %516 = vmatprep.subr.mxu0 0.0
      %517 = vmatpush1.msra.mxu0 0.0
      %518 = vmatprep.subr.mxu0 0.0
      %519 = vmatpush1.msra.mxu0 0.0
      %520 = vmatprep.subr.mxu0 0.0
      %521 = vmatpush1.msra.mxu0 0.0
      %522 = vmatprep.subr.mxu0 0.0
      %523 = vmatpush1.msra.mxu0 0.0
      %524 = vmatprep.subr.mxu0 0.0
      %525 = vmatpush1.msra.mxu0 0.0
      %526 = vmatprep.subr.mxu0 0.0
      %527 = vmatpush1.msra.mxu0 0.0
      %528 = vmatprep.subr.mxu0 0.0
      %529 = vmatpush1.msra.mxu0 0.0
      %530 = vmatprep.subr.mxu0 0.0
      %531 = vmatpush1.msra.mxu0 0.0
      %532 = vmatprep.mubr.f32.mxu0 0.0
      %533 = vmatmul.mubr.f32.gmra.mrb[0].mxu0 %v460
      %v534 = vpop.f32.mrb[0].mxu0
      %v535 = vadd.f32 0.0, %v534
      %v536 = vpop.f32.mrb[0].mxu0
      %v537 = vadd.f32 0.0, %v536
      %538 = vmatprep.mubr.f32.mxu0 0.0
      %539 = vmatmul.mubr.f32.gmra.mrb[0].mxu0 %v463
      %v540 = vpop.f32.mrb[0].mxu0
      %v541 = vadd.f32 0.0, %v540
      %v542 = vpop.f32.mrb[0].mxu0
      %v543 = vadd.f32 0.0, %v542
      %544 = vmatprep.mubr.f32.mxu0 0.0
      %545 = vmatmul.mubr.f32.gmra.mrb[0].mxu0 %v466
      %v546 = vpop.f32.mrb[0].mxu0
      %v547 = vadd.f32 0.0, %v546
      %v548 = vpop.f32.mrb[0].mxu0
      %v549 = vadd.f32 0.0, %v548
      %550 = vdwg.mxu0
      %551 = vrot.lane.b32.xlu0 %v535, 1
      %v552 = vpop.permute.xlu0 %551
      %553 = vrot.lane.b32.xlu0 %v537, 1
      %v554 = vpop.permute.xlu0 %553
      %v555 = vsel %vm427, %v552, %v554
      %v556 = vsel %vm427, %v554, %v552
      %v557 = vmul.f32 %v556, %v296
      %v558 = vmul.f32 %v555, %v300
      %v559 = vadd.f32 %v557, %v541
      %v560 = vadd.f32 %v558, %v543
      %561 = vrot.lane.b32.xlu0 %v547, 127
      %v562 = vpop.permute.xlu0 %561
      %563 = vrot.lane.b32.xlu0 %v549, 127
      %v564 = vpop.permute.xlu0 %563
      %v565 = vsel %vm438, %v562, %v564
      %v566 = vsel %vm438, %v564, %v562
      %v567 = vmul.f32 %v565, %v309
      %v568 = vmul.f32 %v566, %v313
      %v569 = vadd.f32 %v559, %v567
      %v570 = vadd.f32 %v560, %v568
      %572 = vset.pattern.permute.xlu0 0
      %573 = vperm.xlu0 %572, %v457
      %v574 = vpop.permute.xlu0 %573
      %v576 = vadd.f32 %v569, %v574
      %v577 = vadd.f32 %v570, %v574
      %v578 = vmax.f32 %v576, 0.0
      %v579 = vmax.f32 %v577, 0.0
      %580 = vst [vmem:[%s289] sm:$0xff] %v578
      %581 = vst [vmem:[%s289 + $0x8] sm:$0xff] %v579
      %s582 = smul.u32 2, %s22
      %p583 = scmp.lt.s32.totalorder %s21, 1
      %s584 = scalar_select %p583, %s21, 1
      %p585 = scmp.lt.s32.totalorder %s582, 1
      %s586 = scalar_select %p585, %s582, 1
      %s587 = smul.addr %s584, 2
      %s588 = sadd.s32 %s586, %s587
      %s589 = smul.addr %s588, 8
      %s590 = scalar_lea.vmem %s6, %s589
      // Predicated region
      $region45: #{standard_unit.1} parent=43 // pred_check
        %p591 = pneg %p182
      $region46: #{standard_unit.1} parent=43 // pred_check_branch
        %593 = sbr.rel (%p591) target = $region48
      $region47: #{standard_unit.1} parent=43 // pred_region
        %s594 = smul.u32 2, %s22
      $region48: #{standard_unit.1} parent=43 // pred_fallthru
        _
    $region44: #{standard_unit.1} parent=5 // pred_fallthru
      _
    %p595 = scmp.le.s32.totalorder 2, %s12
    // Predicated region
    $region49: #{standard_unit.1} parent=5 // pred_check
      %p596 = pneg %p595
    $region50: #{standard_unit.1} parent=5 // pred_check_branch
      %598 = sbr.rel (%p596) target = $region52
    $region51: #{standard_unit.1} parent=5 // pred_region
      %s599 = ssub.s32 %s12, 2
      // Predicated region
      $region53: #{standard_unit.1} parent=51 // pred_check
        %p600 = pneg %p188
      $region54: #{standard_unit.1} parent=51 // pred_check_branch
        %602 = sbr.rel (%p600) target = $region56
      $region55: #{standard_unit.1} parent=51 // pred_region
        %s603 = smul.u32 2, %s24
        %p604 = scmp.lt.s32.totalorder %s23, 1
        %s605 = scalar_select %p604, %s23, 1
        %p606 = scmp.lt.s32.totalorder %s603, 1
        %s607 = scalar_select %p606, %s603, 1
        %s608 = smul.addr %s605, 2
        %s609 = sadd.s32 %s607, %s608
        %s610 = smul.addr %s609, 8
        %s611 = scalar_lea.vmem %s6, %s610
      $region56: #{standard_unit.1} parent=51 // pred_fallthru
        _
    $region52: #{standard_unit.1} parent=5 // pred_fallthru
      _
  $region6: #{standard_unit.1} parent=0 // loop_footer
    %s16 = sadd.s32 1, %s12
  $region7: #{standard_unit.1} parent=0 // loop_footer_branch
    %11 = sbr.rel target = $region3
  $region8: #{standard_unit.1} parent=0 // loop_exit
    _

</llo_original>
